<compile_context>
chip_gen: v7x
topology: tpu7x:2x2x1
jax: 0.10.0
libtpu: 0.0.40
codegen_flags: <defaults>
</compile_context>

<pallas_src>
import functools

import jax
import jax.numpy as jnp
from jax.experimental import pallas as pl
from jax.experimental.pallas import tpu as pltpu


HIDDEN = 256  # fixed in the PyTorch __init__ (ignores hidden_list)
LANE = 128


def _round_up(v, m):
    return ((v + m - 1) // m) * m


def _bf16_epilogue_ok():
    """bf16 VPU elementwise is profitable on v6e/v7x; v5e has no bf16 VPU."""
    try:
        kind = jax.devices()[0].device_kind.lower()
    except Exception:
        return False
    return ("v6" in kind) or ("v7" in kind)


def _resmlp_kernel(x_ref, w0_ref, b0_ref, w1_ref, b1_ref, w2_ref, b2_ref,
                   o_ref, *, bf16_epilogue):
    """One row-tile of the residual MLP.

    x_ref : (tm, in_dim)       VMEM  f32  (cast to bf16 in-kernel)
    w0_ref: (in_dim, H)        VMEM  bf16    b0_ref: (1, H)       f32
    w1_ref: (H, H)             VMEM  bf16    b1_ref: (1, H)       f32
    w2_ref: (H, out_pad)       VMEM  bf16    b2_ref: (1, out_pad) f32
    o_ref : (tm, out_pad)      VMEM  bf16
    """
    x = x_ref[...].astype(jnp.bfloat16)      # in-kernel cast (hides under MXU)

    # fc0 (bf16 operands, f32 accumulate on the MXU)
    h_acc = jnp.dot(x, w0_ref[...], preferred_element_type=jnp.float32)

    if bf16_epilogue:
        # v6e / v7x: bf16 VPU packs 2 elems/lane; the acc->bf16 cast is needed
        # for the next MXU input anyway, so do bias+relu in bf16.
        h = jnp.maximum(h_acc.astype(jnp.bfloat16)
                        + b0_ref[...].astype(jnp.bfloat16), 0)
        r_acc = jnp.dot(h, w1_ref[...], preferred_element_type=jnp.float32)
        r = jnp.maximum(r_acc.astype(jnp.bfloat16)
                        + b1_ref[...].astype(jnp.bfloat16), 0)
        h2 = h + r                                       # residual add (bf16)
        o = jnp.dot(h2, w2_ref[...], preferred_element_type=jnp.float32)
        o_ref[...] = (o.astype(jnp.bfloat16)
                      + b2_ref[...].astype(jnp.bfloat16)).astype(o_ref.dtype)
    else:
        # v5e-class: no bf16 VPU — keep elementwise math in f32.
        h = jnp.maximum(h_acc + b0_ref[...], 0.0)
        r_acc = jnp.dot(h.astype(jnp.bfloat16), w1_ref[...],
                        preferred_element_type=jnp.float32)
        r = jnp.maximum(r_acc + b1_ref[...], 0.0)
        h2 = (h + r).astype(jnp.bfloat16)
        o = jnp.dot(h2, w2_ref[...], preferred_element_type=jnp.float32)
        o_ref[...] = (o + b2_ref[...]).astype(o_ref.dtype)


@functools.partial(jax.jit, static_argnames=("tm",))
def resmlp_forward(x, params, *, tm=4096):
    """x: (..., in_dim) -> (..., out_dim) float32."""
    w0, b0, w1, b1, w2, b2 = params
    in_dim = x.shape[-1]
    out_dim = w2.shape[1]
    lead_shape = x.shape[:-1]

    bf16_epi = _bf16_epilogue_ok()

    # Lane-dense output: pad fcout's columns to a multiple of 128 lanes.
    out_pad = _round_up(max(out_dim, LANE), LANE)
    if out_pad != out_dim:
        w2p = jnp.pad(w2, ((0, 0), (0, out_pad - out_dim)))
        b2p = jnp.pad(b2, ((0, 0), (0, out_pad - out_dim)))
    else:
        w2p, b2p = w2, b2

    # x stays f32 in HBM; the bf16 cast happens inside the kernel (one HBM
    # pass over x instead of three).
    x2d = x.reshape(-1, in_dim)
    n = x2d.shape[0]

    # Row tile: big enough to amortize the ~0.35us per-grid-step overhead,
    # capped so the grid still has ~8 steps (lets v7x's 2 TCs split work),
    # and rounded to >=16 rows (bf16 sublane tile) / multiples of 256 (MXU M).
    tm_cap = max(256, _round_up(pl.cdiv(n, 8), 256))
    tm_eff = min(tm, tm_cap, _round_up(n, 16))
    grid = (pl.cdiv(n, tm_eff),)   # ragged last block handled by Pallas

    kernel = functools.partial(_resmlp_kernel, bf16_epilogue=bf16_epi)

    out2d = pl.pallas_call(
        kernel,
        out_shape=jax.ShapeDtypeStruct((n, out_pad), jnp.bfloat16),
        grid_spec=pltpu.PrefetchScalarGridSpec(
            num_scalar_prefetch=0,
            grid=grid,
            in_specs=[
                pl.BlockSpec((tm_eff, in_dim), lambda i: (i, 0)),    # x tile (f32)
                pl.BlockSpec((in_dim, HIDDEN), lambda i: (0, 0)),    # w0
                pl.BlockSpec((1, HIDDEN), lambda i: (0, 0)),         # b0
                pl.BlockSpec((HIDDEN, HIDDEN), lambda i: (0, 0)),    # w1
                pl.BlockSpec((1, HIDDEN), lambda i: (0, 0)),         # b1
                pl.BlockSpec((HIDDEN, out_pad), lambda i: (0, 0)),   # w2
                pl.BlockSpec((1, out_pad), lambda i: (0, 0)),        # b2
            ],
            out_specs=pl.BlockSpec((tm_eff, out_pad), lambda i: (i, 0)),
        ),
        compiler_params=pltpu.CompilerParams(
            dimension_semantics=("parallel",),
            # Safe on v7x (64 MiB physical) while leaving v6e/v5e headroom.
            vmem_limit_bytes=48 * 1024 * 1024,
        ),
    )(x2d, w0, b0, w1, b1, w2p, b2p)

    # Slice off the lane padding; the f32 upcast fuses into this same pass.
    out2d = out2d[:, :out_dim].astype(jnp.float32)
    return out2d.reshape(*lead_shape, out_dim)


def init_params(key, in_dim, out_dim, hidden=HIDDEN):
    """Deterministic init mimicking nn.Linear (U[-1/sqrt(fan_in), 1/sqrt(fan_in)]).
    Weights returned pre-transposed to (in_features, out_features) in bf16;
    biases as (1, F) in f32."""
    ks = jax.random.split(key, 6)

    def lin(kw, kb, fan_in, fan_out):
        bound = 1.0 / jnp.sqrt(fan_in)
        w = jax.random.uniform(kw, (fan_in, fan_out), jnp.float32,
                               -bound, bound).astype(jnp.bfloat16)
        b = jax.random.uniform(kb, (1, fan_out), jnp.float32, -bound, bound)
        return w, b

    w0, b0 = lin(ks[0], ks[1], in_dim, hidden)   # fc0
    w1, b1 = lin(ks[2], ks[3], hidden, hidden)   # fc
    w2, b2 = lin(ks[4], ks[5], hidden, out_dim)  # fcout
    return (w0, b0, w1, b1, w2, b2)


def _reference(x, params, bf16_epilogue):
    """Pure-JAX reference mirroring the kernel's dtype/cast sequence."""
    w0, b0, w1, b1, w2, b2 = params
    shape = x.shape[:-1]
    out_dim = w2.shape[1]
    xb = x.reshape(-1, x.shape[-1]).astype(jnp.bfloat16)
    h_acc = jnp.dot(xb, w0, preferred_element_type=jnp.float32)
    if bf16_epilogue:
        h = jnp.maximum(h_acc.astype(jnp.bfloat16) + b0.astype(jnp.bfloat16), 0)
        r_acc = jnp.dot(h, w1, preferred_element_type=jnp.float32)
        r = jnp.maximum(r_acc.astype(jnp.bfloat16) + b1.astype(jnp.bfloat16), 0)
        h2 = h + r
        o = jnp.dot(h2, w2, preferred_element_type=jnp.float32)
        o = o.astype(jnp.bfloat16) + b2.astype(jnp.bfloat16)
    else:
        h = jnp.maximum(h_acc + b0, 0.0)
        r_acc = jnp.dot(h.astype(jnp.bfloat16), w1,
                        preferred_element_type=jnp.float32)
        r = jnp.maximum(r_acc + b1, 0.0)
        h2 = (h + r).astype(jnp.bfloat16)
        o = jnp.dot(h2, w2, preferred_element_type=jnp.float32) + b2
    o = o.astype(jnp.bfloat16).astype(jnp.float32)   # mirror bf16 output store
    return o.reshape(*shape, out_dim)


if __name__ == "__main__":
    key = jax.random.PRNGKey(0)
    k_x, k_x2, k_p = jax.random.split(key, 3)

    in_dim, out_dim = 32, 4
    params = init_params(k_p, in_dim, out_dim)
    bf16_epi = _bf16_epilogue_ok()

    # Small shape consistent with the module: leading dims (2, 8) -> 16 rows.
    batch, seq = 2, 8
    x = jax.random.normal(k_x, (batch, seq, in_dim), jnp.float32)
    out = jax.block_until_ready(resmlp_forward(x, params))
    ref = _reference(x, params, bf16_epi)
    assert out.shape == (batch, seq, out_dim), out.shape
    assert jnp.allclose(out, ref, atol=2e-2, rtol=2e-2), (
        float(jnp.max(jnp.abs(out - ref))))

    # Second check exercising a multi-step grid with a ragged last block.
    x_big = jax.random.normal(k_x2, (3, 400, in_dim), jnp.float32)  # 1200 rows
    out_big = jax.block_until_ready(resmlp_forward(x_big, params))
    ref_big = _reference(x_big, params, bf16_epi)
    assert out_big.shape == (3, 400, out_dim), out_big.shape
    assert jnp.allclose(out_big, ref_big, atol=2e-2, rtol=2e-2), (
        float(jnp.max(jnp.abs(out_big - ref_big))))

    print("KERNEL_OK")
</pallas_src>

<mosaic_0001>
module attributes {stable_mosaic.version = 11 : i64} {
  func.func @_resmlp_kernel(%arg0: i32, %arg1: memref<16x32xf32, #tpu.memory_space<vmem>>, %arg2: memref<32x256xbf16, #tpu.memory_space<vmem>>, %arg3: memref<1x256xf32, #tpu.memory_space<vmem>>, %arg4: memref<256x256xbf16, #tpu.memory_space<vmem>>, %arg5: memref<1x256xf32, #tpu.memory_space<vmem>>, %arg6: memref<256x128xbf16, #tpu.memory_space<vmem>>, %arg7: memref<1x128xf32, #tpu.memory_space<vmem>>, %arg8: memref<16x128xbf16, #tpu.memory_space<vmem>>) attributes {dimension_semantics = [#tpu.dimension_semantics<parallel>], iteration_bounds = array<i64: 1>, scalar_prefetch = 0 : i64, scratch_operands = 0 : i64, tpu.core_type = #tpu.core_type<tc>, window_params = [{transform_indices = @transform_0, window_bounds = array<i64: 16, 32>}, {pipeline_mode = #tpu.pipeline_mode<synchronous>, transform_indices = @transform_1, window_bounds = array<i64: 32, 256>}, {pipeline_mode = #tpu.pipeline_mode<synchronous>, transform_indices = @transform_2, window_bounds = array<i64: 1, 256>}, {pipeline_mode = #tpu.pipeline_mode<synchronous>, transform_indices = @transform_3, window_bounds = array<i64: 256, 256>}, {pipeline_mode = #tpu.pipeline_mode<synchronous>, transform_indices = @transform_4, window_bounds = array<i64: 1, 256>}, {pipeline_mode = #tpu.pipeline_mode<synchronous>, transform_indices = @transform_5, window_bounds = array<i64: 256, 128>}, {pipeline_mode = #tpu.pipeline_mode<synchronous>, transform_indices = @transform_6, window_bounds = array<i64: 1, 128>}, {transform_indices = @transform_7, window_bounds = array<i64: 16, 128>}]} {
    %c0 = arith.constant 0 : index
    %c0_0 = arith.constant 0 : index
    %0 = vector.load %arg1[%c0, %c0_0] : memref<16x32xf32, #tpu.memory_space<vmem>>, vector<16x32xf32>
    %1 = arith.truncf %0 : vector<16x32xf32> to vector<16x32xbf16>
    %c0_1 = arith.constant 0 : index
    %c0_2 = arith.constant 0 : index
    %2 = vector.load %arg2[%c0_1, %c0_2] : memref<32x256xbf16, #tpu.memory_space<vmem>>, vector<32x256xbf16>
    %cst = arith.constant dense<0.000000e+00> : vector<16x256xf32>
    %3 = tpu.matmul %1, %2, %cst {dimension_numbers = #tpu.dot_dimension_numbers<[1], [0], [0], [1], [0, 0, 1, 1], [], []>} : vector<16x32xbf16>, vector<32x256xbf16>, vector<16x256xf32> -> vector<16x256xf32>
    %c0_3 = arith.constant 0 : index
    %c0_4 = arith.constant 0 : index
    %4 = vector.load %arg3[%c0_3, %c0_4] : memref<1x256xf32, #tpu.memory_space<vmem>>, vector<1x256xf32>
    %5 = vector.broadcast %4 : vector<1x256xf32> to vector<16x256xf32>
    %6 = arith.addf %3, %5 : vector<16x256xf32>
    %cst_5 = arith.constant 0.000000e+00 : f32
    %7 = vector.broadcast %cst_5 : f32 to vector<16x256xf32>
    %8 = arith.maximumf %6, %7 : vector<16x256xf32>
    %9 = arith.truncf %8 : vector<16x256xf32> to vector<16x256xbf16>
    %c0_6 = arith.constant 0 : index
    %c0_7 = arith.constant 0 : index
    %10 = vector.load %arg4[%c0_6, %c0_7] : memref<256x256xbf16, #tpu.memory_space<vmem>>, vector<256x256xbf16>
    %cst_8 = arith.constant dense<0.000000e+00> : vector<16x256xf32>
    %11 = tpu.matmul %9, %10, %cst_8 {dimension_numbers = #tpu.dot_dimension_numbers<[1], [0], [0], [1], [0, 0, 1, 1], [], []>} : vector<16x256xbf16>, vector<256x256xbf16>, vector<16x256xf32> -> vector<16x256xf32>
    %c0_9 = arith.constant 0 : index
    %c0_10 = arith.constant 0 : index
    %12 = vector.load %arg5[%c0_9, %c0_10] : memref<1x256xf32, #tpu.memory_space<vmem>>, vector<1x256xf32>
    %13 = vector.broadcast %12 : vector<1x256xf32> to vector<16x256xf32>
    %14 = arith.addf %11, %13 : vector<16x256xf32>
    %cst_11 = arith.constant 0.000000e+00 : f32
    %15 = vector.broadcast %cst_11 : f32 to vector<16x256xf32>
    %16 = arith.maximumf %14, %15 : vector<16x256xf32>
    %17 = arith.addf %8, %16 : vector<16x256xf32>
    %18 = arith.truncf %17 : vector<16x256xf32> to vector<16x256xbf16>
    %c0_12 = arith.constant 0 : index
    %c0_13 = arith.constant 0 : index
    %19 = vector.load %arg6[%c0_12, %c0_13] : memref<256x128xbf16, #tpu.memory_space<vmem>>, vector<256x128xbf16>
    %cst_14 = arith.constant dense<0.000000e+00> : vector<16x128xf32>
    %20 = tpu.matmul %18, %19, %cst_14 {dimension_numbers = #tpu.dot_dimension_numbers<[1], [0], [0], [1], [0, 0, 1, 1], [], []>} : vector<16x256xbf16>, vector<256x128xbf16>, vector<16x128xf32> -> vector<16x128xf32>
    %c0_15 = arith.constant 0 : index
    %c0_16 = arith.constant 0 : index
    %21 = vector.load %arg7[%c0_15, %c0_16] : memref<1x128xf32, #tpu.memory_space<vmem>>, vector<1x128xf32>
    %22 = vector.broadcast %21 : vector<1x128xf32> to vector<16x128xf32>
    %23 = arith.addf %20, %22 : vector<16x128xf32>
    %24 = arith.truncf %23 : vector<16x128xf32> to vector<16x128xbf16>
    %c0_17 = arith.constant 0 : index
    %c0_18 = arith.constant 0 : index
    %25 = vector.load %arg8[%c0_17, %c0_18] : memref<16x128xbf16, #tpu.memory_space<vmem>>, vector<16x128xbf16>
    tpu.vector_store %arg8[%c0_17, %c0_18], %24 {strides = array<i32>} : memref<16x128xbf16, #tpu.memory_space<vmem>>, vector<16x128xbf16>,
    return
  }
  func.func @transform_0(%arg0: i32) -> (i32, i32) {
    %c0_i32 = arith.constant 0 : i32
    %c0_i32_0 = arith.constant 0 : i32
    return %arg0, %c0_i32 : i32, i32
  }
  func.func @transform_1(%arg0: i32) -> (i32, i32) {
    %c0_i32 = arith.constant 0 : i32
    %c0_i32_0 = arith.constant 0 : i32
    %c0_i32_1 = arith.constant 0 : i32
    return %c0_i32, %c0_i32_0 : i32, i32
  }
  func.func @transform_2(%arg0: i32) -> (i32, i32) {
    %c0_i32 = arith.constant 0 : i32
    %c0_i32_0 = arith.constant 0 : i32
    %c0_i32_1 = arith.constant 0 : i32
    return %c0_i32, %c0_i32_0 : i32, i32
  }
  func.func @transform_3(%arg0: i32) -> (i32, i32) {
    %c0_i32 = arith.constant 0 : i32
    %c0_i32_0 = arith.constant 0 : i32
    %c0_i32_1 = arith.constant 0 : i32
    return %c0_i32, %c0_i32_0 : i32, i32
  }
  func.func @transform_4(%arg0: i32) -> (i32, i32) {
    %c0_i32 = arith.constant 0 : i32
    %c0_i32_0 = arith.constant 0 : i32
    %c0_i32_1 = arith.constant 0 : i32
    return %c0_i32, %c0_i32_0 : i32, i32
  }
  func.func @transform_5(%arg0: i32) -> (i32, i32) {
    %c0_i32 = arith.constant 0 : i32
    %c0_i32_0 = arith.constant 0 : i32
    %c0_i32_1 = arith.constant 0 : i32
    return %c0_i32, %c0_i32_0 : i32, i32
  }
  func.func @transform_6(%arg0: i32) -> (i32, i32) {
    %c0_i32 = arith.constant 0 : i32
    %c0_i32_0 = arith.constant 0 : i32
    %c0_i32_1 = arith.constant 0 : i32
    return %c0_i32, %c0_i32_0 : i32, i32
  }
  func.func @transform_7(%arg0: i32) -> (i32, i32) {
    %c0_i32 = arith.constant 0 : i32
    %c0_i32_0 = arith.constant 0 : i32
    return %arg0, %c0_i32 : i32, i32
  }
}

</mosaic_0001>

<llo_original>
// kernel: resmlp_forward.1
$region0: #{resmlp_forward.1}
  #allocation0 [shape = 'u32[]', space=smem, size = 0x4, offset = 0x4, fixed_abs, tag = 'smem constant byte address 0x4 - core index']
  #allocation1 [shape = 'u32[144,128]{1,0:T(1,128)}', space=vmem, size = 0x12000, scoped, tag = 'internal scratch']
  %s0 = inlined_call_operand.vmem [shape: f32[16,32], index: 0, kind: input, shape index: {}]
  %s1 = inlined_call_operand.vmem [shape: bf16[32,256], index: 1, kind: input, shape index: {}]
  %s2 = inlined_call_operand.vmem [shape: f32[1,256], index: 2, kind: input, shape index: {}]
  %s3 = inlined_call_operand.vmem [shape: bf16[256,256], index: 3, kind: input, shape index: {}]
  %s4 = inlined_call_operand.vmem [shape: f32[1,256], index: 4, kind: input, shape index: {}]
  %s5 = inlined_call_operand.vmem [shape: bf16[256,128], index: 5, kind: input, shape index: {}]
  %s6 = inlined_call_operand.vmem [shape: f32[1,128], index: 6, kind: input, shape index: {}]
  %s7 = inlined_call_operand.vmem [shape: bf16[16,128], index: 7, kind: output, shape index: {}]
  %s8 = sld [smem:[#allocation0]]
  $region38: #{resmlp_forward.1} parent=0
    _
  %s10 = ssub.s32 1, %s8
  %s11 = scalar_select 0, %s10, %s8
  // Predicated region
  $region2: #{resmlp_forward.1} parent=0 // pred_check
    _
  $region3: #{resmlp_forward.1} parent=0 // pred_check_branch
    %13 = sbr.rel (0) target = $region5
  $region4: #{resmlp_forward.1} parent=0 // pred_region
    _
  $region5: #{resmlp_forward.1} parent=0 // pred_fallthru
    _
  // Predicated region
  $region6: #{resmlp_forward.1} parent=0 // pred_check
    _
  $region7: #{resmlp_forward.1} parent=0 // pred_check_branch
    %15 = sbr.rel (0) target = $region9
  $region8: #{resmlp_forward.1} parent=0 // pred_region
    _
  $region9: #{resmlp_forward.1} parent=0 // pred_fallthru
    _
  // Predicated region
  $region10: #{resmlp_forward.1} parent=0 // pred_check
    _
  $region11: #{resmlp_forward.1} parent=0 // pred_check_branch
    %17 = sbr.rel (0) target = $region13
  $region12: #{resmlp_forward.1} parent=0 // pred_region
    _
  $region13: #{resmlp_forward.1} parent=0 // pred_fallthru
    _
  // Predicated region
  $region14: #{resmlp_forward.1} parent=0 // pred_check
    _
  $region15: #{resmlp_forward.1} parent=0 // pred_check_branch
    %19 = sbr.rel (0) target = $region17
  $region16: #{resmlp_forward.1} parent=0 // pred_region
    _
  $region17: #{resmlp_forward.1} parent=0 // pred_fallthru
    _
  // Predicated region
  $region18: #{resmlp_forward.1} parent=0 // pred_check
    _
  $region19: #{resmlp_forward.1} parent=0 // pred_check_branch
    %21 = sbr.rel (0) target = $region21
  $region20: #{resmlp_forward.1} parent=0 // pred_region
    _
  $region21: #{resmlp_forward.1} parent=0 // pred_fallthru
    _
  // Predicated region
  $region22: #{resmlp_forward.1} parent=0 // pred_check
    _
  $region23: #{resmlp_forward.1} parent=0 // pred_check_branch
    %23 = sbr.rel (0) target = $region25
  $region24: #{resmlp_forward.1} parent=0 // pred_region
    _
  $region25: #{resmlp_forward.1} parent=0 // pred_fallthru
    _
  // Predicated region
  $region26: #{resmlp_forward.1} parent=0 // pred_check
    _
  $region27: #{resmlp_forward.1} parent=0 // pred_check_branch
    %25 = sbr.rel (0) target = $region29
  $region28: #{resmlp_forward.1} parent=0 // pred_region
    _
  $region29: #{resmlp_forward.1} parent=0 // pred_fallthru
    _
  %v27 = vld [vmem:[%s0] sm:$0xff]
  %v28 = vld [vmem:[%s0 + $0x8] sm:$0xff]
  %v29 = vpack.c.bf16 %v28, %v27
  %v30 = vld [vmem:[%s1] sm:$0xff]
  %v31 = vld [vmem:[%s1 + $0x8] sm:$0xff]
  %v32 = vld [vmem:[%s1 + $0x10] sm:$0xff]
  %v33 = vld [vmem:[%s1 + $0x18] sm:$0xff]
  %v34 = vld [vmem:[%s2] sm:$0x3]
  %v36 = vlaneseq
  %v37 = vshrl.u32 %v36, 7
  %v38 = vsub.s32 0, %v37
  %v39 = vrot.slane %v34, %v38
  %v40 = vlaneseq
  %v41 = vshrl.u32 %v40, 7
  %v42 = vsub.s32 1, %v41
  %v43 = vrot.slane %v34, %v42
  %v50 = vunpack.c.l.b16 %v30
  %v51 = vunpack.c.h.b16 %v30
  %v52 = vunpack.c.l.b16 %v31
  %v53 = vunpack.c.h.b16 %v31
  %v54 = vunpack.c.l.b16 %v32
  %v55 = vunpack.c.h.b16 %v32
  %v56 = vunpack.c.l.b16 %v33
  %v57 = vunpack.c.h.b16 %v33
  %v58 = vpack.c.b16 %v52, %v50
  %v59 = vpack.c.b16 %v53, %v51
  %v60 = vpack.c.b16 %v56, %v54
  %v61 = vpack.c.b16 %v57, %v55
  %vm66 = vcmask 261120
  %v68 = vsel %vm66, %v29, 0
  %70 = vmatprep.subr.bf16.mxu0 %v59
  %71 = vmatpush1.bf16.msra.mxu0 %v58
  %72 = vmatprep.subr.bf16.mxu0 %v61
  %73 = vmatpush1.bf16.msra.mxu0 %v60
  %74 = vmatprep.subr.bf16.mxu0 0
  %75 = vmatpush1.bf16.msra.mxu0 0
  %76 = vmatprep.subr.bf16.mxu0 0
  %77 = vmatpush1.bf16.msra.mxu0 0
  %78 = vmatprep.subr.bf16.mxu0 0
  %79 = vmatpush1.bf16.msra.mxu0 0
  %80 = vmatprep.subr.bf16.mxu0 0
  %81 = vmatpush1.bf16.msra.mxu0 0
  %82 = vmatprep.subr.bf16.mxu0 0
  %83 = vmatpush1.bf16.msra.mxu0 0
  %84 = vmatprep.subr.bf16.mxu0 0
  %85 = vmatpush1.bf16.msra.mxu0 0
  %86 = vmatprep.subr.bf16.mxu0 0
  %87 = vmatpush1.bf16.msra.mxu0 0
  %88 = vmatprep.subr.bf16.mxu0 0
  %89 = vmatpush1.bf16.msra.mxu0 0
  %90 = vmatprep.subr.bf16.mxu0 0
  %91 = vmatpush1.bf16.msra.mxu0 0
  %92 = vmatprep.subr.bf16.mxu0 0
  %93 = vmatpush1.bf16.msra.mxu0 0
  %94 = vmatprep.subr.bf16.mxu0 0
  %95 = vmatpush1.bf16.msra.mxu0 0
  %96 = vmatprep.subr.bf16.mxu0 0
  %97 = vmatpush1.bf16.msra.mxu0 0
  %98 = vmatprep.subr.bf16.mxu0 0
  %99 = vmatpush1.bf16.msra.mxu0 0
  %100 = vmatprep.subr.bf16.mxu0 0
  %101 = vmatpush1.bf16.msra.mxu0 0
  %102 = vmatprep.mubr.bf16.mxu0 0
  %103 = vmatmul.mubr.bf16.gmra.mrb[0].mxu0 %v68
  %v104 = vpop.f32.mrb[0].mxu0
  %v105 = vadd.f32 %v39, %v104
  %v106 = vpop.f32.mrb[0].mxu0
  %v107 = vadd.f32 %v43, %v106
  %v108 = vpop.f32.mrb[0].mxu0
  %v109 = vadd.f32 %v39, %v108
  %v110 = vpop.f32.mrb[0].mxu0
  %v111 = vadd.f32 %v43, %v110
  %112 = vdwg.mxu0
  %v113 = vmax.f32 %v105, 0.0
  %v114 = vmax.f32 %v107, 0.0
  %v115 = vmax.f32 %v109, 0.0
  %v116 = vmax.f32 %v111, 0.0
  %v117 = vpack.c.bf16 %v115, %v113
  %v118 = vpack.c.bf16 %v116, %v114
  %v119 = vld [vmem:[%s3] sm:$0xff]
  %v120 = vld [vmem:[%s3 + $0x8] sm:$0xff]
  %v121 = vld [vmem:[%s3 + $0x10] sm:$0xff]
  %v122 = vld [vmem:[%s3 + $0x18] sm:$0xff]
  %v123 = vld [vmem:[%s3 + $0x20] sm:$0xff]
  %v124 = vld [vmem:[%s3 + $0x28] sm:$0xff]
  %v125 = vld [vmem:[%s3 + $0x30] sm:$0xff]
  %v126 = vld [vmem:[%s3 + $0x38] sm:$0xff]
  %v127 = vld [vmem:[%s3 + $0x40] sm:$0xff]
  %v128 = vld [vmem:[%s3 + $0x48] sm:$0xff]
  %v129 = vld [vmem:[%s3 + $0x50] sm:$0xff]
  %v130 = vld [vmem:[%s3 + $0x58] sm:$0xff]
  %v131 = vld [vmem:[%s3 + $0x60] sm:$0xff]
  %v132 = vld [vmem:[%s3 + $0x68] sm:$0xff]
  %v133 = vld [vmem:[%s3 + $0x70] sm:$0xff]
  %v134 = vld [vmem:[%s3 + $0x78] sm:$0xff]
  %v135 = vld [vmem:[%s3 + $0x80] sm:$0xff]
  %v136 = vld [vmem:[%s3 + $0x88] sm:$0xff]
  %v137 = vld [vmem:[%s3 + $0x90] sm:$0xff]
  %v138 = vld [vmem:[%s3 + $0x98] sm:$0xff]
  %v139 = vld [vmem:[%s3 + $0xa0] sm:$0xff]
  %v140 = vld [vmem:[%s3 + $0xa8] sm:$0xff]
  %v141 = vld [vmem:[%s3 + $0xb0] sm:$0xff]
  %v142 = vld [vmem:[%s3 + $0xb8] sm:$0xff]
  %v143 = vld [vmem:[%s3 + $0xc0] sm:$0xff]
  %v144 = vld [vmem:[%s3 + $0xc8] sm:$0xff]
  %v145 = vld [vmem:[%s3 + $0xd0] sm:$0xff]
  %v146 = vld [vmem:[%s3 + $0xd8] sm:$0xff]
  %v147 = vld [vmem:[%s3 + $0xe0] sm:$0xff]
  %v148 = vld [vmem:[%s3 + $0xe8] sm:$0xff]
  %v149 = vld [vmem:[%s3 + $0xf0] sm:$0xff]
  %v150 = vld [vmem:[%s3 + $0xf8] sm:$0xff]
  %v151 = vld [vmem:[%s4] sm:$0x3]
  %v153 = vlaneseq
  %v154 = vshrl.u32 %v153, 7
  %v155 = vsub.s32 0, %v154
  %v156 = vrot.slane %v151, %v155
  %v157 = vlaneseq
  %v158 = vshrl.u32 %v157, 7
  %v159 = vsub.s32 1, %v158
  %v160 = vrot.slane %v151, %v159
  %v195 = vunpack.c.l.b16 %v119
  %v196 = vunpack.c.h.b16 %v119
  %v197 = vunpack.c.l.b16 %v120
  %v198 = vunpack.c.h.b16 %v120
  %v199 = vunpack.c.l.b16 %v121
  %v200 = vunpack.c.h.b16 %v121
  %v201 = vunpack.c.l.b16 %v122
  %v202 = vunpack.c.h.b16 %v122
  %v203 = vunpack.c.l.b16 %v123
  %v204 = vunpack.c.h.b16 %v123
  %v205 = vunpack.c.l.b16 %v124
  %v206 = vunpack.c.h.b16 %v124
  %v207 = vunpack.c.l.b16 %v125
  %v208 = vunpack.c.h.b16 %v125
  %v209 = vunpack.c.l.b16 %v126
  %v210 = vunpack.c.h.b16 %v126
  %v211 = vunpack.c.l.b16 %v127
  %v212 = vunpack.c.h.b16 %v127
  %v213 = vunpack.c.l.b16 %v128
  %v214 = vunpack.c.h.b16 %v128
  %v215 = vunpack.c.l.b16 %v129
  %v216 = vunpack.c.h.b16 %v129
  %v217 = vunpack.c.l.b16 %v130
  %v218 = vunpack.c.h.b16 %v130
  %v219 = vunpack.c.l.b16 %v131
  %v220 = vunpack.c.h.b16 %v131
  %v221 = vunpack.c.l.b16 %v132
  %v222 = vunpack.c.h.b16 %v132
  %v223 = vunpack.c.l.b16 %v133
  %v224 = vunpack.c.h.b16 %v133
  %v225 = vunpack.c.l.b16 %v134
  %v226 = vunpack.c.h.b16 %v134
  %v227 = vunpack.c.l.b16 %v135
  %v228 = vunpack.c.h.b16 %v135
  %v229 = vunpack.c.l.b16 %v136
  %v230 = vunpack.c.h.b16 %v136
  %v231 = vunpack.c.l.b16 %v137
  %v232 = vunpack.c.h.b16 %v137
  %v233 = vunpack.c.l.b16 %v138
  %v234 = vunpack.c.h.b16 %v138
  %v235 = vunpack.c.l.b16 %v139
  %v236 = vunpack.c.h.b16 %v139
  %v237 = vunpack.c.l.b16 %v140
  %v238 = vunpack.c.h.b16 %v140
  %v239 = vunpack.c.l.b16 %v141
  %v240 = vunpack.c.h.b16 %v141
  %v241 = vunpack.c.l.b16 %v142
  %v242 = vunpack.c.h.b16 %v142
  %v243 = vunpack.c.l.b16 %v143
  %v244 = vunpack.c.h.b16 %v143
  %v245 = vunpack.c.l.b16 %v144
  %v246 = vunpack.c.h.b16 %v144
  %v247 = vunpack.c.l.b16 %v145
  %v248 = vunpack.c.h.b16 %v145
  %v249 = vunpack.c.l.b16 %v146
  %v250 = vunpack.c.h.b16 %v146
  %v251 = vunpack.c.l.b16 %v147
  %v252 = vunpack.c.h.b16 %v147
  %v253 = vunpack.c.l.b16 %v148
  %v254 = vunpack.c.h.b16 %v148
  %v255 = vunpack.c.l.b16 %v149
  %v256 = vunpack.c.h.b16 %v149
  %v257 = vunpack.c.l.b16 %v150
  %v258 = vunpack.c.h.b16 %v150
  %v259 = vpack.c.b16 %v197, %v195
  %v260 = vpack.c.b16 %v198, %v196
  %v261 = vpack.c.b16 %v201, %v199
  %v262 = vpack.c.b16 %v202, %v200
  %v263 = vpack.c.b16 %v205, %v203
  %v264 = vpack.c.b16 %v206, %v204
  %v265 = vpack.c.b16 %v209, %v207
  %v266 = vpack.c.b16 %v210, %v208
  %v267 = vpack.c.b16 %v213, %v211
  %v268 = vpack.c.b16 %v214, %v212
  %v269 = vpack.c.b16 %v217, %v215
  %v270 = vpack.c.b16 %v218, %v216
  %v271 = vpack.c.b16 %v221, %v219
  %v272 = vpack.c.b16 %v222, %v220
  %v273 = vpack.c.b16 %v225, %v223
  %v274 = vpack.c.b16 %v226, %v224
  %v275 = vpack.c.b16 %v229, %v227
  %v276 = vpack.c.b16 %v230, %v228
  %v277 = vpack.c.b16 %v233, %v231
  %v278 = vpack.c.b16 %v234, %v232
  %v279 = vpack.c.b16 %v237, %v235
  %v280 = vpack.c.b16 %v238, %v236
  %v281 = vpack.c.b16 %v241, %v239
  %v282 = vpack.c.b16 %v242, %v240
  %v283 = vpack.c.b16 %v245, %v243
  %v284 = vpack.c.b16 %v246, %v244
  %v285 = vpack.c.b16 %v249, %v247
  %v286 = vpack.c.b16 %v250, %v248
  %v287 = vpack.c.b16 %v253, %v251
  %v288 = vpack.c.b16 %v254, %v252
  %v289 = vpack.c.b16 %v257, %v255
  %v290 = vpack.c.b16 %v258, %v256
  %323 = vmatprep.subr.bf16.mxu0 %v260
  %324 = vmatpush1.bf16.msra.mxu0 %v259
  %325 = vmatprep.subr.bf16.mxu0 %v262
  %326 = vmatpush1.bf16.msra.mxu0 %v261
  %327 = vmatprep.subr.bf16.mxu0 %v264
  %328 = vmatpush1.bf16.msra.mxu0 %v263
  %329 = vmatprep.subr.bf16.mxu0 %v266
  %330 = vmatpush1.bf16.msra.mxu0 %v265
  %331 = vmatprep.subr.bf16.mxu0 %v268
  %332 = vmatpush1.bf16.msra.mxu0 %v267
  %333 = vmatprep.subr.bf16.mxu0 %v270
  %334 = vmatpush1.bf16.msra.mxu0 %v269
  %335 = vmatprep.subr.bf16.mxu0 %v272
  %336 = vmatpush1.bf16.msra.mxu0 %v271
  %337 = vmatprep.subr.bf16.mxu0 %v274
  %338 = vmatpush1.bf16.msra.mxu0 %v273
  %339 = vmatprep.subr.bf16.mxu0 %v276
  %340 = vmatpush1.bf16.msra.mxu0 %v275
  %341 = vmatprep.subr.bf16.mxu0 %v278
  %342 = vmatpush1.bf16.msra.mxu0 %v277
  %343 = vmatprep.subr.bf16.mxu0 %v280
  %344 = vmatpush1.bf16.msra.mxu0 %v279
  %345 = vmatprep.subr.bf16.mxu0 %v282
  %346 = vmatpush1.bf16.msra.mxu0 %v281
  %347 = vmatprep.subr.bf16.mxu0 %v284
  %348 = vmatpush1.bf16.msra.mxu0 %v283
  %349 = vmatprep.subr.bf16.mxu0 %v286
  %350 = vmatpush1.bf16.msra.mxu0 %v285
  %351 = vmatprep.subr.bf16.mxu0 %v288
  %352 = vmatpush1.bf16.msra.mxu0 %v287
  %353 = vmatprep.subr.bf16.mxu0 %v290
  %354 = vmatpush1.bf16.msra.mxu0 %v289
  %355 = vmatprep.mubr.bf16.mxu0 %v118
  %356 = vmatmul.mubr.bf16.gmra.mrb[0].mxu0 %v117
  %v357 = vpop.f32.mrb[0].mxu0
  %v358 = vadd.f32 %v156, %v357
  %v359 = vpop.f32.mrb[0].mxu0
  %v360 = vadd.f32 %v160, %v359
  %v361 = vpop.f32.mrb[0].mxu0
  %v362 = vadd.f32 %v156, %v361
  %v363 = vpop.f32.mrb[0].mxu0
  %v364 = vadd.f32 %v160, %v363
  %365 = vdwg.mxu0
  %v366 = vmax.f32 %v358, 0.0
  %v367 = vmax.f32 %v360, 0.0
  %v368 = vmax.f32 %v362, 0.0
  %v369 = vmax.f32 %v364, 0.0
  %v370 = vadd.f32 %v113, %v366
  %v371 = vadd.f32 %v114, %v367
  %v372 = vadd.f32 %v115, %v368
  %v373 = vadd.f32 %v116, %v369
  %v374 = vpack.c.bf16 %v372, %v370
  %v375 = vpack.c.bf16 %v373, %v371
  %v376 = vld [vmem:[%s5] sm:$0xf]
  %v377 = vld [vmem:[%s5 + $0x4] sm:$0xf]
  %v378 = vld [vmem:[%s5 + $0x8] sm:$0xf]
  %v379 = vld [vmem:[%s5 + $0xc] sm:$0xf]
  %v380 = vld [vmem:[%s5 + $0x10] sm:$0xf]
  %v381 = vld [vmem:[%s5 + $0x14] sm:$0xf]
  %v382 = vld [vmem:[%s5 + $0x18] sm:$0xf]
  %v383 = vld [vmem:[%s5 + $0x1c] sm:$0xf]
  %v384 = vld [vmem:[%s5 + $0x20] sm:$0xf]
  %v385 = vld [vmem:[%s5 + $0x24] sm:$0xf]
  %v386 = vld [vmem:[%s5 + $0x28] sm:$0xf]
  %v387 = vld [vmem:[%s5 + $0x2c] sm:$0xf]
  %v388 = vld [vmem:[%s5 + $0x30] sm:$0xf]
  %v389 = vld [vmem:[%s5 + $0x34] sm:$0xf]
  %v390 = vld [vmem:[%s5 + $0x38] sm:$0xf]
  %v391 = vld [vmem:[%s5 + $0x3c] sm:$0xf]
  %v392 = vld [vmem:[%s5 + $0x40] sm:$0xf]
  %v393 = vld [vmem:[%s5 + $0x44] sm:$0xf]
  %v394 = vld [vmem:[%s5 + $0x48] sm:$0xf]
  %v395 = vld [vmem:[%s5 + $0x4c] sm:$0xf]
  %v396 = vld [vmem:[%s5 + $0x50] sm:$0xf]
  %v397 = vld [vmem:[%s5 + $0x54] sm:$0xf]
  %v398 = vld [vmem:[%s5 + $0x58] sm:$0xf]
  %v399 = vld [vmem:[%s5 + $0x5c] sm:$0xf]
  %v400 = vld [vmem:[%s5 + $0x60] sm:$0xf]
  %v401 = vld [vmem:[%s5 + $0x64] sm:$0xf]
  %v402 = vld [vmem:[%s5 + $0x68] sm:$0xf]
  %v403 = vld [vmem:[%s5 + $0x6c] sm:$0xf]
  %v404 = vld [vmem:[%s5 + $0x70] sm:$0xf]
  %v405 = vld [vmem:[%s5 + $0x74] sm:$0xf]
  %v406 = vld [vmem:[%s5 + $0x78] sm:$0xf]
  %v407 = vld [vmem:[%s5 + $0x7c] sm:$0xf]
  %v408 = vld [vmem:[%s6] sm:$0x1]
  %v410 = vlaneseq
  %v411 = vshrl.u32 %v410, 7
  %v412 = vsub.s32 0, %v411
  %v413 = vrot.slane %v408, %v412
  %v447 = vunpack.c.l.b16 %v376
  %v448 = vunpack.c.l.b16 %v377
  %v449 = vunpack.c.l.b16 %v378
  %v450 = vunpack.c.l.b16 %v379
  %v451 = vunpack.c.l.b16 %v380
  %v452 = vunpack.c.l.b16 %v381
  %v453 = vunpack.c.l.b16 %v382
  %v454 = vunpack.c.l.b16 %v383
  %v455 = vunpack.c.l.b16 %v384
  %v456 = vunpack.c.l.b16 %v385
  %v457 = vunpack.c.l.b16 %v386
  %v458 = vunpack.c.l.b16 %v387
  %v459 = vunpack.c.l.b16 %v388
  %v460 = vunpack.c.l.b16 %v389
  %v461 = vunpack.c.l.b16 %v390
  %v462 = vunpack.c.l.b16 %v391
  %v463 = vunpack.c.l.b16 %v392
  %v464 = vunpack.c.l.b16 %v393
  %v465 = vunpack.c.l.b16 %v394
  %v466 = vunpack.c.l.b16 %v395
  %v467 = vunpack.c.l.b16 %v396
  %v468 = vunpack.c.l.b16 %v397
  %v469 = vunpack.c.l.b16 %v398
  %v470 = vunpack.c.l.b16 %v399
  %v471 = vunpack.c.l.b16 %v400
  %v472 = vunpack.c.l.b16 %v401
  %v473 = vunpack.c.l.b16 %v402
  %v474 = vunpack.c.l.b16 %v403
  %v475 = vunpack.c.l.b16 %v404
  %v476 = vunpack.c.l.b16 %v405
  %v477 = vunpack.c.l.b16 %v406
  %v478 = vunpack.c.l.b16 %v407
  %v479 = vpack.c.b16 %v448, %v447
  %v480 = vpack.c.b16 %v450, %v449
  %v481 = vpack.c.b16 %v452, %v451
  %v482 = vpack.c.b16 %v454, %v453
  %v483 = vpack.c.b16 %v456, %v455
  %v484 = vpack.c.b16 %v458, %v457
  %v485 = vpack.c.b16 %v460, %v459
  %v486 = vpack.c.b16 %v462, %v461
  %v487 = vpack.c.b16 %v464, %v463
  %v488 = vpack.c.b16 %v466, %v465
  %v489 = vpack.c.b16 %v468, %v467
  %v490 = vpack.c.b16 %v470, %v469
  %v491 = vpack.c.b16 %v472, %v471
  %v492 = vpack.c.b16 %v474, %v473
  %v493 = vpack.c.b16 %v476, %v475
  %v494 = vpack.c.b16 %v478, %v477
  %511 = vmatprep.subr.bf16.mxu0 0
  %512 = vmatpush1.bf16.msra.mxu0 %v479
  %513 = vmatprep.subr.bf16.mxu0 0
  %514 = vmatpush1.bf16.msra.mxu0 %v480
  %515 = vmatprep.subr.bf16.mxu0 0
  %516 = vmatpush1.bf16.msra.mxu0 %v481
  %517 = vmatprep.subr.bf16.mxu0 0
  %518 = vmatpush1.bf16.msra.mxu0 %v482
  %519 = vmatprep.subr.bf16.mxu0 0
  %520 = vmatpush1.bf16.msra.mxu0 %v483
  %521 = vmatprep.subr.bf16.mxu0 0
  %522 = vmatpush1.bf16.msra.mxu0 %v484
  %523 = vmatprep.subr.bf16.mxu0 0
  %524 = vmatpush1.bf16.msra.mxu0 %v485
  %525 = vmatprep.subr.bf16.mxu0 0
  %526 = vmatpush1.bf16.msra.mxu0 %v486
  %527 = vmatprep.subr.bf16.mxu0 0
  %528 = vmatpush1.bf16.msra.mxu0 %v487
  %529 = vmatprep.subr.bf16.mxu0 0
  %530 = vmatpush1.bf16.msra.mxu0 %v488
  %531 = vmatprep.subr.bf16.mxu0 0
  %532 = vmatpush1.bf16.msra.mxu0 %v489
  %533 = vmatprep.subr.bf16.mxu0 0
  %534 = vmatpush1.bf16.msra.mxu0 %v490
  %535 = vmatprep.subr.bf16.mxu0 0
  %536 = vmatpush1.bf16.msra.mxu0 %v491
  %537 = vmatprep.subr.bf16.mxu0 0
  %538 = vmatpush1.bf16.msra.mxu0 %v492
  %539 = vmatprep.subr.bf16.mxu0 0
  %540 = vmatpush1.bf16.msra.mxu0 %v493
  %541 = vmatprep.subr.bf16.mxu0 0
  %542 = vmatpush1.bf16.msra.mxu0 %v494
  %543 = vmatprep.mubr.bf16.mxu0 %v375
  %544 = vmatmul.mubr.bf16.gmra.mrb[0].mxu0 %v374
  %v545 = vpop.f32.mrb[0].mxu0
  %v546 = vadd.f32 %v413, %v545
  %v547 = vpop.f32.mrb[0].mxu0
  %v548 = vpop.f32.mrb[0].mxu0
  %v549 = vadd.f32 %v413, %v548
  %v550 = vpop.f32.mrb[0].mxu0
  %551 = vdwg.mxu0
  %v552 = vpack.c.bf16 %v549, %v546
  %v554 = vunpack.c.l.b16 %v552
  %v555 = vunpack.c.h.b16 %v552
  %v556 = vpack.c.b16 %v554, %v554
  %v557 = vpack.c.b16 %v555, %v555
  %560 = vst [vmem:[%s7] sm:$0xf] %v556
  %561 = vst [vmem:[%s7 + $0x4] sm:$0xf] %v557
  // Predicated region
  $region30: #{resmlp_forward.1} parent=0 // pred_check
    _
  $region31: #{resmlp_forward.1} parent=0 // pred_check_branch
    %563 = sbr.rel (0) target = $region33
  $region32: #{resmlp_forward.1} parent=0 // pred_region
    _
  $region33: #{resmlp_forward.1} parent=0 // pred_fallthru
    _
  // Predicated region
  $region34: #{resmlp_forward.1} parent=0 // pred_check
    _
  $region35: #{resmlp_forward.1} parent=0 // pred_check_branch
    %565 = sbr.rel (0) target = $region37
  $region36: #{resmlp_forward.1} parent=0 // pred_region
    _
  $region37: #{resmlp_forward.1} parent=0 // pred_fallthru
    _

</llo_original>
